<compile_context>
chip_gen: v6e
topology: v6e:2x2x1
jax: 0.10.0
libtpu: 0.0.40
codegen_flags: <defaults>
</compile_context>

<pallas_src>
import functools

import jax
import jax.numpy as jnp
from jax.experimental import pallas as pl
from jax.experimental.pallas import tpu as pltpu

INPUT_SIZE = 7
HIDDEN1_SIZE = 2
HIDDEN2_SIZE = 2
OUTPUT_SIZE = 1


def _cdiv(a, b):
    return -(-a // b)


def _round_up(n, m):
    return _cdiv(n, m) * m


def _dense_vpu(inputs, w_ref, b_ref, n_in, n_out, relu):
    """Unrolled VPU dense layer.

    `inputs` is a list of n_in dense (tg, 128) tiles; weights/biases are tiny
    SMEM tables whose elements are scalar-broadcast into vector FMAs.
    Returns a list of n_out dense (tg, 128) tiles.
    """
    outs = []
    for j in range(n_out):
        acc = inputs[0] * w_ref[0, j] + b_ref[j]
        for k in range(1, n_in):
            acc = acc + inputs[k] * w_ref[k, j]
        if relu:
            acc = jnp.maximum(acc, 0.0)
        outs.append(acc)
    return outs


def mlp_kernel(xT_ref, w1_ref, b1_ref, w2_ref, b2_ref, w3_ref, b3_ref, o_ref):
    # xT_ref: (INPUT_SIZE, tg, 128) f32 VMEM block (batch packed across
    #         sublanes and lanes). w*/b*: SMEM weight/bias tables.
    # o_ref:  (tg, 128) f32 VMEM block -> dense, unmasked vector stores.
    rows = [xT_ref[k] for k in range(INPUT_SIZE)]            # each (tg, 128)

    h1 = _dense_vpu(rows, w1_ref, b1_ref, INPUT_SIZE, HIDDEN1_SIZE, relu=True)
    h2 = _dense_vpu(h1, w2_ref, b2_ref, HIDDEN1_SIZE, HIDDEN2_SIZE, relu=True)
    out = _dense_vpu(h2, w3_ref, b3_ref, HIDDEN2_SIZE, OUTPUT_SIZE, relu=False)

    o_ref[...] = out[0]                                      # (tg, 128)


@functools.partial(jax.jit, static_argnames=("max_tile", "v7x_core_parallel"))
def mlp_forward(x, params, *, max_tile=65536, v7x_core_parallel=False):
    w1, b1, w2, b2, w3, b3 = params
    batch = x.shape[0]

    # ---- Tiling: work in 128-lane groups ------------------------------------
    # max_tile is validated down to a multiple of 128 so tb is always lane-dense.
    max_g = max(max_tile // 128, 1)          # lane-groups per tile (cap)
    g = _cdiv(batch, 128)                    # lane-groups actually needed
    n_tiles = _cdiv(g, max_g)                # grid steps
    tg = _cdiv(g, n_tiles)                   # lane-groups per tile
    if n_tiles > 1:
        # Sublane (8) alignment required when the block is not the full dim.
        tg = _round_up(tg, 8)
        n_tiles = _cdiv(g, tg)
    b_pad = n_tiles * tg * 128               # padded batch (<= small waste)

    # ---- Host-side packing: single pad + transpose + reshape ----------------
    x_t = x.astype(jnp.float32).T            # (INPUT_SIZE, batch)
    if b_pad != batch:
        x_t = jnp.pad(x_t, ((0, 0), (0, b_pad - batch)))
    xT = x_t.reshape(INPUT_SIZE, b_pad // 128, 128)

    smem = pl.BlockSpec(memory_space=pltpu.MemorySpace.SMEM)

    flops = 2 * batch * (INPUT_SIZE * HIDDEN1_SIZE
                         + HIDDEN1_SIZE * HIDDEN2_SIZE
                         + HIDDEN2_SIZE * OUTPUT_SIZE)
    bytes_accessed = 4 * b_pad * (INPUT_SIZE + OUTPUT_SIZE)

    dim_sem = ((pltpu.CORE_PARALLEL,) if v7x_core_parallel
               else ("parallel",))

    out_pad = pl.pallas_call(
        mlp_kernel,
        out_shape=jax.ShapeDtypeStruct((b_pad // 128, 128), jnp.float32),
        grid=(n_tiles,),
        in_specs=[
            pl.BlockSpec((INPUT_SIZE, tg, 128), lambda i: (0, i, 0)),  # x tiles
            smem, smem, smem, smem, smem, smem,                        # params
        ],
        out_specs=pl.BlockSpec((tg, 128), lambda i: (i, 0)),
        compiler_params=pltpu.CompilerParams(dimension_semantics=dim_sem),
        cost_estimate=pl.CostEstimate(
            flops=flops, transcendentals=0, bytes_accessed=bytes_accessed),
    )(xT, w1, b1, w2, b2, w3, b3)

    # Unpack (b_pad//128, 128) -> (batch, 1). Row-major flatten matches packing.
    return out_pad.reshape(-1)[:batch].reshape(batch, OUTPUT_SIZE)


def init_params(key):
    """Deterministic init mimicking PyTorch nn.Linear (uniform(-1/sqrt(in), 1/sqrt(in)))."""
    def linear(key, fan_in, fan_out):
        kw, kb = jax.random.split(key)
        bound = 1.0 / jnp.sqrt(jnp.float32(fan_in))
        # Weight stored as (in, out): transpose of PyTorch's (out, in); bias 1-D.
        w = jax.random.uniform(kw, (fan_in, fan_out), jnp.float32, -bound, bound)
        b = jax.random.uniform(kb, (fan_out,), jnp.float32, -bound, bound)
        return w, b

    k1, k2, k3 = jax.random.split(key, 3)
    w1, b1 = linear(k1, INPUT_SIZE, HIDDEN1_SIZE)
    w2, b2 = linear(k2, HIDDEN1_SIZE, HIDDEN2_SIZE)
    w3, b3 = linear(k3, HIDDEN2_SIZE, OUTPUT_SIZE)
    return (w1, b1, w2, b2, w3, b3)


def mlp_reference(x, params):
    w1, b1, w2, b2, w3, b3 = params
    h1 = jnp.maximum(x @ w1 + b1, 0.0)
    h2 = jnp.maximum(h1 @ w2 + b2, 0.0)
    return h2 @ w3 + b3


if __name__ == "__main__":
    key = jax.random.PRNGKey(0)
    kx, kx2, kp = jax.random.split(key, 3)
    params = init_params(kp)

    # Small, PyTorch-spec-consistent input: (batch=8, input_size=7).
    batch = 8
    x = jax.random.normal(kx, (batch, INPUT_SIZE), jnp.float32)
    out = jax.block_until_ready(mlp_forward(x, params))
    ref = mlp_reference(x, params)
    assert out.shape == (batch, OUTPUT_SIZE)
    assert jnp.allclose(out, ref, atol=1e-5, rtol=1e-5), "mismatch vs reference"

    # Exercise the multi-tile streaming + ragged-batch padding path with a
    # deliberately tiny tile cap (still a small problem).
    batch2 = 2500
    x2 = jax.random.normal(kx2, (batch2, INPUT_SIZE), jnp.float32)
    out2 = jax.block_until_ready(mlp_forward(x2, params, max_tile=1024))
    ref2 = mlp_reference(x2, params)
    assert out2.shape == (batch2, OUTPUT_SIZE)
    assert jnp.allclose(out2, ref2, atol=1e-5, rtol=1e-5), "mismatch vs reference (tiled)"

    print("KERNEL_OK")
</pallas_src>

<mosaic_0001>
module attributes {stable_mosaic.version = 11 : i64} {
  func.func @mlp_kernel(%arg0: i32, %arg1: memref<7x1x128xf32, #tpu.memory_space<vmem>>, %arg2: memref<7x2xf32, #tpu.memory_space<smem>>, %arg3: memref<2xf32, #tpu.memory_space<smem>>, %arg4: memref<2x2xf32, #tpu.memory_space<smem>>, %arg5: memref<2xf32, #tpu.memory_space<smem>>, %arg6: memref<2x1xf32, #tpu.memory_space<smem>>, %arg7: memref<1xf32, #tpu.memory_space<smem>>, %arg8: memref<1x128xf32, #tpu.memory_space<vmem>>) attributes {dimension_semantics = [#tpu.dimension_semantics<parallel>], iteration_bounds = array<i64: 1>, scalar_prefetch = 0 : i64, scratch_operands = 0 : i64, tpu.core_type = #tpu.core_type<tc>, window_params = [{transform_indices = @transform_0, window_bounds = array<i64: 7, 1, 128>}, {transform_indices = @transform_1, window_bounds = array<i64: 7, 2>}, {transform_indices = @transform_2, window_bounds = array<i64: 2>}, {transform_indices = @transform_3, window_bounds = array<i64: 2, 2>}, {transform_indices = @transform_4, window_bounds = array<i64: 2>}, {transform_indices = @transform_5, window_bounds = array<i64: 2, 1>}, {transform_indices = @transform_6, window_bounds = array<i64: 1>}, {transform_indices = @transform_7, window_bounds = array<i64: 1, 128>}]} {
    %c0 = arith.constant 0 : index
    %c0_0 = arith.constant 0 : index
    %c0_1 = arith.constant 0 : index
    %0 = vector.load %arg1[%c0, %c0_0, %c0_1] : memref<7x1x128xf32, #tpu.memory_space<vmem>>, vector<1x1x128xf32>
    %1 = vector.shape_cast %0 : vector<1x1x128xf32> to vector<1x128xf32>
    %c1 = arith.constant 1 : index
    %c0_2 = arith.constant 0 : index
    %c0_3 = arith.constant 0 : index
    %2 = vector.load %arg1[%c1, %c0_2, %c0_3] : memref<7x1x128xf32, #tpu.memory_space<vmem>>, vector<1x1x128xf32>
    %3 = vector.shape_cast %2 : vector<1x1x128xf32> to vector<1x128xf32>
    %c2 = arith.constant 2 : index
    %c0_4 = arith.constant 0 : index
    %c0_5 = arith.constant 0 : index
    %4 = vector.load %arg1[%c2, %c0_4, %c0_5] : memref<7x1x128xf32, #tpu.memory_space<vmem>>, vector<1x1x128xf32>
    %5 = vector.shape_cast %4 : vector<1x1x128xf32> to vector<1x128xf32>
    %c3 = arith.constant 3 : index
    %c0_6 = arith.constant 0 : index
    %c0_7 = arith.constant 0 : index
    %6 = vector.load %arg1[%c3, %c0_6, %c0_7] : memref<7x1x128xf32, #tpu.memory_space<vmem>>, vector<1x1x128xf32>
    %7 = vector.shape_cast %6 : vector<1x1x128xf32> to vector<1x128xf32>
    %c4 = arith.constant 4 : index
    %c0_8 = arith.constant 0 : index
    %c0_9 = arith.constant 0 : index
    %8 = vector.load %arg1[%c4, %c0_8, %c0_9] : memref<7x1x128xf32, #tpu.memory_space<vmem>>, vector<1x1x128xf32>
    %9 = vector.shape_cast %8 : vector<1x1x128xf32> to vector<1x128xf32>
    %c5 = arith.constant 5 : index
    %c0_10 = arith.constant 0 : index
    %c0_11 = arith.constant 0 : index
    %10 = vector.load %arg1[%c5, %c0_10, %c0_11] : memref<7x1x128xf32, #tpu.memory_space<vmem>>, vector<1x1x128xf32>
    %11 = vector.shape_cast %10 : vector<1x1x128xf32> to vector<1x128xf32>
    %c6 = arith.constant 6 : index
    %c0_12 = arith.constant 0 : index
    %c0_13 = arith.constant 0 : index
    %12 = vector.load %arg1[%c6, %c0_12, %c0_13] : memref<7x1x128xf32, #tpu.memory_space<vmem>>, vector<1x1x128xf32>
    %13 = vector.shape_cast %12 : vector<1x1x128xf32> to vector<1x128xf32>
    %c0_14 = arith.constant 0 : index
    %c0_15 = arith.constant 0 : index
    %14 = memref.load %arg2[%c0_14, %c0_15] : memref<7x2xf32, #tpu.memory_space<smem>>
    %15 = vector.broadcast %14 : f32 to vector<1x128xf32>
    %16 = arith.mulf %1, %15 : vector<1x128xf32>
    %c0_16 = arith.constant 0 : index
    %17 = memref.load %arg3[%c0_16] : memref<2xf32, #tpu.memory_space<smem>>
    %18 = vector.broadcast %17 : f32 to vector<1x128xf32>
    %19 = arith.addf %16, %18 : vector<1x128xf32>
    %c1_17 = arith.constant 1 : index
    %c0_18 = arith.constant 0 : index
    %20 = memref.load %arg2[%c1_17, %c0_18] : memref<7x2xf32, #tpu.memory_space<smem>>
    %21 = vector.broadcast %20 : f32 to vector<1x128xf32>
    %22 = arith.mulf %3, %21 : vector<1x128xf32>
    %23 = arith.addf %19, %22 : vector<1x128xf32>
    %c2_19 = arith.constant 2 : index
    %c0_20 = arith.constant 0 : index
    %24 = memref.load %arg2[%c2_19, %c0_20] : memref<7x2xf32, #tpu.memory_space<smem>>
    %25 = vector.broadcast %24 : f32 to vector<1x128xf32>
    %26 = arith.mulf %5, %25 : vector<1x128xf32>
    %27 = arith.addf %23, %26 : vector<1x128xf32>
    %c3_21 = arith.constant 3 : index
    %c0_22 = arith.constant 0 : index
    %28 = memref.load %arg2[%c3_21, %c0_22] : memref<7x2xf32, #tpu.memory_space<smem>>
    %29 = vector.broadcast %28 : f32 to vector<1x128xf32>
    %30 = arith.mulf %7, %29 : vector<1x128xf32>
    %31 = arith.addf %27, %30 : vector<1x128xf32>
    %c4_23 = arith.constant 4 : index
    %c0_24 = arith.constant 0 : index
    %32 = memref.load %arg2[%c4_23, %c0_24] : memref<7x2xf32, #tpu.memory_space<smem>>
    %33 = vector.broadcast %32 : f32 to vector<1x128xf32>
    %34 = arith.mulf %9, %33 : vector<1x128xf32>
    %35 = arith.addf %31, %34 : vector<1x128xf32>
    %c5_25 = arith.constant 5 : index
    %c0_26 = arith.constant 0 : index
    %36 = memref.load %arg2[%c5_25, %c0_26] : memref<7x2xf32, #tpu.memory_space<smem>>
    %37 = vector.broadcast %36 : f32 to vector<1x128xf32>
    %38 = arith.mulf %11, %37 : vector<1x128xf32>
    %39 = arith.addf %35, %38 : vector<1x128xf32>
    %c6_27 = arith.constant 6 : index
    %c0_28 = arith.constant 0 : index
    %40 = memref.load %arg2[%c6_27, %c0_28] : memref<7x2xf32, #tpu.memory_space<smem>>
    %41 = vector.broadcast %40 : f32 to vector<1x128xf32>
    %42 = arith.mulf %13, %41 : vector<1x128xf32>
    %43 = arith.addf %39, %42 : vector<1x128xf32>
    %cst = arith.constant 0.000000e+00 : f32
    %44 = vector.broadcast %cst : f32 to vector<1x128xf32>
    %45 = arith.maximumf %43, %44 : vector<1x128xf32>
    %c0_29 = arith.constant 0 : index
    %c1_30 = arith.constant 1 : index
    %46 = memref.load %arg2[%c0_29, %c1_30] : memref<7x2xf32, #tpu.memory_space<smem>>
    %47 = vector.broadcast %46 : f32 to vector<1x128xf32>
    %48 = arith.mulf %1, %47 : vector<1x128xf32>
    %c1_31 = arith.constant 1 : index
    %49 = memref.load %arg3[%c1_31] : memref<2xf32, #tpu.memory_space<smem>>
    %50 = vector.broadcast %49 : f32 to vector<1x128xf32>
    %51 = arith.addf %48, %50 : vector<1x128xf32>
    %c1_32 = arith.constant 1 : index
    %c1_33 = arith.constant 1 : index
    %52 = memref.load %arg2[%c1_32, %c1_33] : memref<7x2xf32, #tpu.memory_space<smem>>
    %53 = vector.broadcast %52 : f32 to vector<1x128xf32>
    %54 = arith.mulf %3, %53 : vector<1x128xf32>
    %55 = arith.addf %51, %54 : vector<1x128xf32>
    %c2_34 = arith.constant 2 : index
    %c1_35 = arith.constant 1 : index
    %56 = memref.load %arg2[%c2_34, %c1_35] : memref<7x2xf32, #tpu.memory_space<smem>>
    %57 = vector.broadcast %56 : f32 to vector<1x128xf32>
    %58 = arith.mulf %5, %57 : vector<1x128xf32>
    %59 = arith.addf %55, %58 : vector<1x128xf32>
    %c3_36 = arith.constant 3 : index
    %c1_37 = arith.constant 1 : index
    %60 = memref.load %arg2[%c3_36, %c1_37] : memref<7x2xf32, #tpu.memory_space<smem>>
    %61 = vector.broadcast %60 : f32 to vector<1x128xf32>
    %62 = arith.mulf %7, %61 : vector<1x128xf32>
    %63 = arith.addf %59, %62 : vector<1x128xf32>
    %c4_38 = arith.constant 4 : index
    %c1_39 = arith.constant 1 : index
    %64 = memref.load %arg2[%c4_38, %c1_39] : memref<7x2xf32, #tpu.memory_space<smem>>
    %65 = vector.broadcast %64 : f32 to vector<1x128xf32>
    %66 = arith.mulf %9, %65 : vector<1x128xf32>
    %67 = arith.addf %63, %66 : vector<1x128xf32>
    %c5_40 = arith.constant 5 : index
    %c1_41 = arith.constant 1 : index
    %68 = memref.load %arg2[%c5_40, %c1_41] : memref<7x2xf32, #tpu.memory_space<smem>>
    %69 = vector.broadcast %68 : f32 to vector<1x128xf32>
    %70 = arith.mulf %11, %69 : vector<1x128xf32>
    %71 = arith.addf %67, %70 : vector<1x128xf32>
    %c6_42 = arith.constant 6 : index
    %c1_43 = arith.constant 1 : index
    %72 = memref.load %arg2[%c6_42, %c1_43] : memref<7x2xf32, #tpu.memory_space<smem>>
    %73 = vector.broadcast %72 : f32 to vector<1x128xf32>
    %74 = arith.mulf %13, %73 : vector<1x128xf32>
    %75 = arith.addf %71, %74 : vector<1x128xf32>
    %cst_44 = arith.constant 0.000000e+00 : f32
    %76 = vector.broadcast %cst_44 : f32 to vector<1x128xf32>
    %77 = arith.maximumf %75, %76 : vector<1x128xf32>
    %c0_45 = arith.constant 0 : index
    %c0_46 = arith.constant 0 : index
    %78 = memref.load %arg4[%c0_45, %c0_46] : memref<2x2xf32, #tpu.memory_space<smem>>
    %79 = vector.broadcast %78 : f32 to vector<1x128xf32>
    %80 = arith.mulf %45, %79 : vector<1x128xf32>
    %c0_47 = arith.constant 0 : index
    %81 = memref.load %arg5[%c0_47] : memref<2xf32, #tpu.memory_space<smem>>
    %82 = vector.broadcast %81 : f32 to vector<1x128xf32>
    %83 = arith.addf %80, %82 : vector<1x128xf32>
    %c1_48 = arith.constant 1 : index
    %c0_49 = arith.constant 0 : index
    %84 = memref.load %arg4[%c1_48, %c0_49] : memref<2x2xf32, #tpu.memory_space<smem>>
    %85 = vector.broadcast %84 : f32 to vector<1x128xf32>
    %86 = arith.mulf %77, %85 : vector<1x128xf32>
    %87 = arith.addf %83, %86 : vector<1x128xf32>
    %cst_50 = arith.constant 0.000000e+00 : f32
    %88 = vector.broadcast %cst_50 : f32 to vector<1x128xf32>
    %89 = arith.maximumf %87, %88 : vector<1x128xf32>
    %c0_51 = arith.constant 0 : index
    %c1_52 = arith.constant 1 : index
    %90 = memref.load %arg4[%c0_51, %c1_52] : memref<2x2xf32, #tpu.memory_space<smem>>
    %91 = vector.broadcast %90 : f32 to vector<1x128xf32>
    %92 = arith.mulf %45, %91 : vector<1x128xf32>
    %c1_53 = arith.constant 1 : index
    %93 = memref.load %arg5[%c1_53] : memref<2xf32, #tpu.memory_space<smem>>
    %94 = vector.broadcast %93 : f32 to vector<1x128xf32>
    %95 = arith.addf %92, %94 : vector<1x128xf32>
    %c1_54 = arith.constant 1 : index
    %c1_55 = arith.constant 1 : index
    %96 = memref.load %arg4[%c1_54, %c1_55] : memref<2x2xf32, #tpu.memory_space<smem>>
    %97 = vector.broadcast %96 : f32 to vector<1x128xf32>
    %98 = arith.mulf %77, %97 : vector<1x128xf32>
    %99 = arith.addf %95, %98 : vector<1x128xf32>
    %cst_56 = arith.constant 0.000000e+00 : f32
    %100 = vector.broadcast %cst_56 : f32 to vector<1x128xf32>
    %101 = arith.maximumf %99, %100 : vector<1x128xf32>
    %c0_57 = arith.constant 0 : index
    %c0_58 = arith.constant 0 : index
    %102 = memref.load %arg6[%c0_57, %c0_58] : memref<2x1xf32, #tpu.memory_space<smem>>
    %103 = vector.broadcast %102 : f32 to vector<1x128xf32>
    %104 = arith.mulf %89, %103 : vector<1x128xf32>
    %c0_59 = arith.constant 0 : index
    %105 = memref.load %arg7[%c0_59] : memref<1xf32, #tpu.memory_space<smem>>
    %106 = vector.broadcast %105 : f32 to vector<1x128xf32>
    %107 = arith.addf %104, %106 : vector<1x128xf32>
    %c1_60 = arith.constant 1 : index
    %c0_61 = arith.constant 0 : index
    %108 = memref.load %arg6[%c1_60, %c0_61] : memref<2x1xf32, #tpu.memory_space<smem>>
    %109 = vector.broadcast %108 : f32 to vector<1x128xf32>
    %110 = arith.mulf %101, %109 : vector<1x128xf32>
    %111 = arith.addf %107, %110 : vector<1x128xf32>
    %c0_62 = arith.constant 0 : index
    %c0_63 = arith.constant 0 : index
    %112 = vector.load %arg8[%c0_62, %c0_63] : memref<1x128xf32, #tpu.memory_space<vmem>>, vector<1x128xf32>
    tpu.vector_store %arg8[%c0_62, %c0_63], %111 {strides = array<i32>} : memref<1x128xf32, #tpu.memory_space<vmem>>, vector<1x128xf32>,
    return
  }
  func.func @transform_0(%arg0: i32) -> (i32, i32, i32) {
    %c0_i32 = arith.constant 0 : i32
    %c0_i32_0 = arith.constant 0 : i32
    %c0_i32_1 = arith.constant 0 : i32
    return %c0_i32, %arg0, %c0_i32_0 : i32, i32, i32
  }
  func.func @transform_1(%arg0: i32) -> (i32, i32) {
    %c0_i32 = arith.constant 0 : i32
    %c0_i32_0 = arith.constant 0 : i32
    %c0_i32_1 = arith.constant 0 : i32
    return %c0_i32, %c0_i32_0 : i32, i32
  }
  func.func @transform_2(%arg0: i32) -> i32 {
    %c0_i32 = arith.constant 0 : i32
    %c0_i32_0 = arith.constant 0 : i32
    return %c0_i32 : i32
  }
  func.func @transform_3(%arg0: i32) -> (i32, i32) {
    %c0_i32 = arith.constant 0 : i32
    %c0_i32_0 = arith.constant 0 : i32
    %c0_i32_1 = arith.constant 0 : i32
    return %c0_i32, %c0_i32_0 : i32, i32
  }
  func.func @transform_4(%arg0: i32) -> i32 {
    %c0_i32 = arith.constant 0 : i32
    %c0_i32_0 = arith.constant 0 : i32
    return %c0_i32 : i32
  }
  func.func @transform_5(%arg0: i32) -> (i32, i32) {
    %c0_i32 = arith.constant 0 : i32
    %c0_i32_0 = arith.constant 0 : i32
    %c0_i32_1 = arith.constant 0 : i32
    return %c0_i32, %c0_i32_0 : i32, i32
  }
  func.func @transform_6(%arg0: i32) -> i32 {
    %c0_i32 = arith.constant 0 : i32
    %c0_i32_0 = arith.constant 0 : i32
    return %c0_i32 : i32
  }
  func.func @transform_7(%arg0: i32) -> (i32, i32) {
    %c0_i32 = arith.constant 0 : i32
    %c0_i32_0 = arith.constant 0 : i32
    return %arg0, %c0_i32 : i32, i32
  }
}

</mosaic_0001>

<llo_original>
// kernel: mlp_forward.1
$region0: #{mlp_forward.1}
  #allocation0 [shape = 'u32[]', space=smem, size = 0x4, offset = 0x4, fixed_abs, tag = 'smem constant byte address 0x4 - core index']
  #allocation1 [shape = 'u32[144,128]{1,0:T(1,128)}', space=vmem, size = 0x12000, scoped, tag = 'internal scratch']
  #allocation2 [shape = 'f32[1]{0:T(128)S(6)}', space=smem, size = 0x200, scoped, tag = 'scoped memory for mlp_forward.1']
  %s0 = inlined_call_operand.vmem [shape: f32[7,1,128], index: 0, kind: input, shape index: {}]
  %s1 = inlined_call_operand.vmem [shape: f32[7,2], index: 1, kind: input, shape index: {}]
  %s2 = inlined_call_operand.vmem [shape: f32[2], index: 2, kind: input, shape index: {}]
  %s3 = inlined_call_operand.vmem [shape: f32[2,2], index: 3, kind: input, shape index: {}]
  %s4 = inlined_call_operand.vmem [shape: f32[2], index: 4, kind: input, shape index: {}]
  %s5 = inlined_call_operand.vmem [shape: f32[2,1], index: 5, kind: input, shape index: {}]
  %s6 = inlined_call_operand.<no memory space> [shape: f32[1], index: 6, kind: input, shape index: {}]
  %s7 = inlined_call_operand.vmem [shape: f32[1,128], index: 7, kind: output, shape index: {}]
  %s8 = sld [smem:[#allocation0]]
  $region58: #{mlp_forward.1} parent=0
    _
  %s10 = ssub.s32 1, %s8
  %s11 = scalar_select 0, %s10, %s8
  %12 = sst [smem:[#allocation2]] %s6
  $region1: #{mlp_forward.1} parent=0
    #allocation3 [shape = 'u8[4096]{0}', space=smem, size = 0x1000, scoped, tag = 'input window, operand 1, single buffered']
    #allocation4 [shape = 's32[1]{0}', space=sflag, size = 0x4, scoped, tag = 'scoped memory for mlp_forward.1']
    #allocation5 [shape = 'u8[512]{0}', space=smem, size = 0x200, scoped, tag = 'input window, operand 2, single buffered']
    #allocation6 [shape = 's32[1]{0}', space=sflag, size = 0x4, scoped, tag = 'scoped memory for mlp_forward.1']
    #allocation7 [shape = 'u8[1024]{0}', space=smem, size = 0x400, scoped, tag = 'input window, operand 3, single buffered']
    #allocation8 [shape = 'u8[512]{0}', space=smem, size = 0x200, scoped, tag = 'input window, operand 4, single buffered']
    #allocation9 [shape = 's32[1]{0}', space=sflag, size = 0x4, scoped, tag = 'scoped memory for mlp_forward.1']
    #allocation10 [shape = 'u8[1024]{0}', space=smem, size = 0x400, scoped, tag = 'input window, operand 5, single buffered']
    %13 = vsyncpa [#allocation4], 0
    %14 = vsyncpa [#allocation6], 0
    %15 = vsyncpa [#allocation9], 0
    // Predicated region
    $region2: #{mlp_forward.1} parent=1 // pred_check
      _
    $region3: #{mlp_forward.1} parent=1 // pred_check_branch
      %17 = sbr.rel (0) target = $region5
    $region4: #{mlp_forward.1} parent=1 // pred_region
      _
    $region5: #{mlp_forward.1} parent=1 // pred_fallthru
      _
    // Predicated region
    $region6: #{mlp_forward.1} parent=1 // pred_check
      _
    $region7: #{mlp_forward.1} parent=1 // pred_check_branch
      %19 = sbr.rel (0) target = $region9
    $region8: #{mlp_forward.1} parent=1 // pred_region
      %s21 = ssub.s32 128, 128
      %22 = vsyncadd [#allocation4], %s21
      %s24 = sshll.u32 %s1, 4
      %s25 = int_to_ptr.vmem [resolvable:$true] %s24
      %27 = dma.vmem_to_smem %s25, 128, [#allocation3], [#allocation4]
    $region9: #{mlp_forward.1} parent=1 // pred_fallthru
      _
    // Predicated region
    $region10: #{mlp_forward.1} parent=1 // pred_check
      _
    $region11: #{mlp_forward.1} parent=1 // pred_check_branch
      %29 = sbr.rel (0) target = $region13
    $region12: #{mlp_forward.1} parent=1 // pred_region
      %s31 = ssub.s32 16, 16
      %32 = vsyncadd [#allocation6], %s31
      %s34 = sshll.u32 %s2, 4
      %s35 = int_to_ptr.vmem [resolvable:$true] %s34
      %37 = dma.vmem_to_smem %s35, 16, [#allocation5], [#allocation6]
    $region13: #{mlp_forward.1} parent=1 // pred_fallthru
      _
    // Predicated region
    $region14: #{mlp_forward.1} parent=1 // pred_check
      _
    $region15: #{mlp_forward.1} parent=1 // pred_check_branch
      %39 = sbr.rel (0) target = $region17
    $region16: #{mlp_forward.1} parent=1 // pred_region
      %s41 = ssub.s32 32, 32
      %42 = vsyncadd [#allocation6], %s41
      %s44 = sshll.u32 %s3, 4
      %s45 = int_to_ptr.vmem [resolvable:$true] %s44
      %47 = dma.vmem_to_smem %s45, 32, [#allocation7], [#allocation6]
    $region17: #{mlp_forward.1} parent=1 // pred_fallthru
      _
    // Predicated region
    $region18: #{mlp_forward.1} parent=1 // pred_check
      _
    $region19: #{mlp_forward.1} parent=1 // pred_check_branch
      %49 = sbr.rel (0) target = $region21
    $region20: #{mlp_forward.1} parent=1 // pred_region
      %s51 = ssub.s32 16, 16
      %52 = vsyncadd [#allocation9], %s51
      %s54 = sshll.u32 %s4, 4
      %s55 = int_to_ptr.vmem [resolvable:$true] %s54
      %57 = dma.vmem_to_smem %s55, 16, [#allocation8], [#allocation9]
    $region21: #{mlp_forward.1} parent=1 // pred_fallthru
      _
    // Predicated region
    $region22: #{mlp_forward.1} parent=1 // pred_check
      _
    $region23: #{mlp_forward.1} parent=1 // pred_check_branch
      %59 = sbr.rel (0) target = $region25
    $region24: #{mlp_forward.1} parent=1 // pred_region
      %s61 = ssub.s32 32, 32
      %62 = vsyncadd [#allocation9], %s61
      %s64 = sshll.u32 %s5, 4
      %s65 = int_to_ptr.vmem [resolvable:$true] %s64
      %67 = dma.vmem_to_smem %s65, 32, [#allocation10], [#allocation9]
    $region25: #{mlp_forward.1} parent=1 // pred_fallthru
      _
    // Predicated region
    $region26: #{mlp_forward.1} parent=1 // pred_check
      _
    $region27: #{mlp_forward.1} parent=1 // pred_check_branch
      %69 = sbr.rel (0) target = $region29
    $region28: #{mlp_forward.1} parent=1 // pred_region
      _
    $region29: #{mlp_forward.1} parent=1 // pred_fallthru
      _
    // Predicated region
    $region30: #{mlp_forward.1} parent=1 // pred_check
      _
    $region31: #{mlp_forward.1} parent=1 // pred_check_branch
      %71 = sbr.rel (0) target = $region33
    $region32: #{mlp_forward.1} parent=1 // pred_region
      %72 = dma.done [#allocation4], 128
    $region33: #{mlp_forward.1} parent=1 // pred_fallthru
      _
    // Predicated region
    $region34: #{mlp_forward.1} parent=1 // pred_check
      _
    $region35: #{mlp_forward.1} parent=1 // pred_check_branch
      %74 = sbr.rel (0) target = $region37
    $region36: #{mlp_forward.1} parent=1 // pred_region
      %75 = dma.done [#allocation6], 16
    $region37: #{mlp_forward.1} parent=1 // pred_fallthru
      _
    // Predicated region
    $region38: #{mlp_forward.1} parent=1 // pred_check
      _
    $region39: #{mlp_forward.1} parent=1 // pred_check_branch
      %77 = sbr.rel (0) target = $region41
    $region40: #{mlp_forward.1} parent=1 // pred_region
      %78 = dma.done [#allocation6], 32
    $region41: #{mlp_forward.1} parent=1 // pred_fallthru
      _
    // Predicated region
    $region42: #{mlp_forward.1} parent=1 // pred_check
      _
    $region43: #{mlp_forward.1} parent=1 // pred_check_branch
      %80 = sbr.rel (0) target = $region45
    $region44: #{mlp_forward.1} parent=1 // pred_region
      %81 = dma.done [#allocation9], 16
    $region45: #{mlp_forward.1} parent=1 // pred_fallthru
      _
    // Predicated region
    $region46: #{mlp_forward.1} parent=1 // pred_check
      _
    $region47: #{mlp_forward.1} parent=1 // pred_check_branch
      %83 = sbr.rel (0) target = $region49
    $region48: #{mlp_forward.1} parent=1 // pred_region
      %84 = dma.done [#allocation9], 32
    $region49: #{mlp_forward.1} parent=1 // pred_fallthru
      _
    %85 = sfence
    %v86 = vld [vmem:[%s0] sm:$0x1]
    %s87 = scalar_lea.vmem %s0, 1
    %v88 = vld [vmem:[%s87] sm:$0x1]
    %s89 = scalar_lea.vmem %s0, 2
    %v90 = vld [vmem:[%s89] sm:$0x1]
    %s91 = scalar_lea.vmem %s0, 3
    %v92 = vld [vmem:[%s91] sm:$0x1]
    %s93 = scalar_lea.vmem %s0, 4
    %v94 = vld [vmem:[%s93] sm:$0x1]
    %s95 = scalar_lea.vmem %s0, 5
    %v96 = vld [vmem:[%s95] sm:$0x1]
    %s97 = scalar_lea.vmem %s0, 6
    %v98 = vld [vmem:[%s97] sm:$0x1]
    %s99 = sld [smem:[#allocation3]]
    %v100 = vstv %s99
    %v101 = vmul.f32 %v86, %v100
    %s102 = sld [smem:[#allocation5]]
    %v103 = vstv %s102
    %v104 = vadd.f32 %v101, %v103
    %s105 = sld [smem:[#allocation3 + $0x80]]
    %v106 = vstv %s105
    %v107 = vmul.f32 %v88, %v106
    %v108 = vadd.f32 %v104, %v107
    %s109 = sld [smem:[#allocation3 + $0x100]]
    %v110 = vstv %s109
    %v111 = vmul.f32 %v90, %v110
    %v112 = vadd.f32 %v108, %v111
    %s113 = sld [smem:[#allocation3 + $0x180]]
    %v114 = vstv %s113
    %v115 = vmul.f32 %v92, %v114
    %v116 = vadd.f32 %v112, %v115
    %s117 = sld [smem:[#allocation3 + $0x200]]
    %v118 = vstv %s117
    %v119 = vmul.f32 %v94, %v118
    %v120 = vadd.f32 %v116, %v119
    %s121 = sld [smem:[#allocation3 + $0x280]]
    %v122 = vstv %s121
    %v123 = vmul.f32 %v96, %v122
    %v124 = vadd.f32 %v120, %v123
    %s125 = sld [smem:[#allocation3 + $0x300]]
    %v126 = vstv %s125
    %v127 = vmul.f32 %v98, %v126
    %v128 = vadd.f32 %v124, %v127
    %v129 = vmax.f32 %v128, 0.0
    %s130 = sld [smem:[#allocation3 + $0x1]]
    %v131 = vstv %s130
    %v132 = vmul.f32 %v86, %v131
    %s133 = sld [smem:[#allocation5 + $0x1]]
    %v134 = vstv %s133
    %v135 = vadd.f32 %v132, %v134
    %s136 = sld [smem:[#allocation3 + $0x81]]
    %v137 = vstv %s136
    %v138 = vmul.f32 %v88, %v137
    %v139 = vadd.f32 %v135, %v138
    %s140 = sld [smem:[#allocation3 + $0x101]]
    %v141 = vstv %s140
    %v142 = vmul.f32 %v90, %v141
    %v143 = vadd.f32 %v139, %v142
    %s144 = sld [smem:[#allocation3 + $0x181]]
    %v145 = vstv %s144
    %v146 = vmul.f32 %v92, %v145
    %v147 = vadd.f32 %v143, %v146
    %s148 = sld [smem:[#allocation3 + $0x201]]
    %v149 = vstv %s148
    %v150 = vmul.f32 %v94, %v149
    %v151 = vadd.f32 %v147, %v150
    %s152 = sld [smem:[#allocation3 + $0x281]]
    %v153 = vstv %s152
    %v154 = vmul.f32 %v96, %v153
    %v155 = vadd.f32 %v151, %v154
    %s156 = sld [smem:[#allocation3 + $0x301]]
    %v157 = vstv %s156
    %v158 = vmul.f32 %v98, %v157
    %v159 = vadd.f32 %v155, %v158
    %v160 = vmax.f32 %v159, 0.0
    %s161 = sld [smem:[#allocation7]]
    %v162 = vstv %s161
    %v163 = vmul.f32 %v129, %v162
    %s164 = sld [smem:[#allocation8]]
    %v165 = vstv %s164
    %v166 = vadd.f32 %v163, %v165
    %s167 = sld [smem:[#allocation7 + $0x80]]
    %v168 = vstv %s167
    %v169 = vmul.f32 %v160, %v168
    %v170 = vadd.f32 %v166, %v169
    %v171 = vmax.f32 %v170, 0.0
    %s172 = sld [smem:[#allocation7 + $0x1]]
    %v173 = vstv %s172
    %v174 = vmul.f32 %v129, %v173
    %s175 = sld [smem:[#allocation8 + $0x1]]
    %v176 = vstv %s175
    %v177 = vadd.f32 %v174, %v176
    %s178 = sld [smem:[#allocation7 + $0x81]]
    %v179 = vstv %s178
    %v180 = vmul.f32 %v160, %v179
    %v181 = vadd.f32 %v177, %v180
    %v182 = vmax.f32 %v181, 0.0
    %s183 = sld [smem:[#allocation10]]
    %v184 = vstv %s183
    %v185 = vmul.f32 %v171, %v184
    %s186 = sld [smem:[#allocation2]]
    %v187 = vstv %s186
    %v188 = vadd.f32 %v185, %v187
    %s189 = sld [smem:[#allocation10 + $0x80]]
    %v190 = vstv %s189
    %v191 = vmul.f32 %v182, %v190
    %v192 = vadd.f32 %v188, %v191
    %193 = vst [vmem:[%s7] sm:$0x1] %v192
    // Predicated region
    $region50: #{mlp_forward.1} parent=1 // pred_check
      _
    $region51: #{mlp_forward.1} parent=1 // pred_check_branch
      %195 = sbr.rel (0) target = $region53
    $region52: #{mlp_forward.1} parent=1 // pred_region
      _
    $region53: #{mlp_forward.1} parent=1 // pred_fallthru
      _
    // Predicated region
    $region54: #{mlp_forward.1} parent=1 // pred_check
      _
    $region55: #{mlp_forward.1} parent=1 // pred_check_branch
      %197 = sbr.rel (0) target = $region57
    $region56: #{mlp_forward.1} parent=1 // pred_region
      _
    $region57: #{mlp_forward.1} parent=1 // pred_fallthru
      _
    %198 = vsyncpa [#allocation4], 1
    %199 = vsyncpa [#allocation6], 1
    %200 = vsyncpa [#allocation9], 1

</llo_original>
